<compile_context>
chip_gen: v5e
topology: v5e:2x2
jax: 0.10.0
libtpu: 0.0.40
codegen_flags: <defaults>
</compile_context>

<pallas_src>
import jax
import jax.numpy as jnp
from jax.experimental import pallas as pl
from jax.experimental.pallas import tpu as pltpu

_TM = 4096          # max row-tile (multiple of 8); ~2 MiB/step of VMEM at bf16
_SPLIT_MIN = 1024   # above this, force >= 2 grid steps (v7x megacore sharding)

_COMPILER_PARAMS = pltpu.CompilerParams(
    dimension_semantics=("parallel",),    # shard row axis across v7x TCs; no-op v5e/v6e
    vmem_limit_bytes=32 * 1024 * 1024,    # overrides v5e's 16 MiB default; < v7x 64 MiB
)


def _round_up8(x):
    return ((x + 7) // 8) * 8


def _row_tile(m):
    """Largest legal row tile (amortizes ~0.35us fixed cost per grid step);
    for large M keep >= 2 grid steps so both v7x TensorCores get work."""
    if m <= _SPLIT_MIN:
        return m                                   # single full-extent block (always legal)
    n_steps = max(2, -(-m // _TM))                 # ceil(m/_TM), but at least 2
    return min(_round_up8(-(-m // n_steps)), m)    # 8-aligned ceil(m/n_steps)


def _bytes(*arrs):
    return sum(a.size * a.dtype.itemsize for a in arrs)


# ----------------------------- Pallas kernels -----------------------------

def _fused_kernel_bias(s_ref, v_ref, ws_ref, wv_ref, b_ref, os_ref, ov_ref):
    """Two MXU matmuls, f32 accumulation, f32 bias add, cast only at store."""
    acc_s = jnp.dot(s_ref[...], ws_ref[...], preferred_element_type=jnp.float32)
    os_ref[...] = (acc_s + b_ref[...]).astype(os_ref.dtype)
    acc_v = jnp.dot(v_ref[...], wv_ref[...], preferred_element_type=jnp.float32)
    ov_ref[...] = acc_v.astype(ov_ref.dtype)


def _fused_kernel_nobias(s_ref, v_ref, ws_ref, wv_ref, os_ref, ov_ref):
    os_ref[...] = jnp.dot(
        s_ref[...], ws_ref[...], preferred_element_type=jnp.float32
    ).astype(os_ref.dtype)
    ov_ref[...] = jnp.dot(
        v_ref[...], wv_ref[...], preferred_element_type=jnp.float32
    ).astype(ov_ref.dtype)


def _mm_kernel(x_ref, w_ref, o_ref):
    o_ref[...] = jnp.dot(
        x_ref[...], w_ref[...], preferred_element_type=jnp.float32
    ).astype(o_ref.dtype)


def _mm_bias_kernel(x_ref, w_ref, b_ref, o_ref):
    acc = jnp.dot(x_ref[...], w_ref[...], preferred_element_type=jnp.float32)
    o_ref[...] = (acc + b_ref[...]).astype(o_ref.dtype)


# ----------------------------- pallas_call wrappers ------------------------

def _fused_linear(s2d, v2d, ws_t, wv_t, bias, out_dtype):
    """s2d:(M,Ks) v2d:(M,Kv) ws_t:(Ks,n_s) wv_t:(Kv,n_v) [bias:(1,n_s)]
    -> ((M,n_s), (M,n_v)) in out_dtype."""
    M, Ks = s2d.shape
    Kv = v2d.shape[1]
    n_s, n_v = ws_t.shape[1], wv_t.shape[1]
    tm = _row_tile(M)
    osize = jnp.dtype(out_dtype).itemsize

    in_specs = [
        pl.BlockSpec((tm, Ks), lambda i: (i, 0)),      # s rows   (pipelined)
        pl.BlockSpec((tm, Kv), lambda i: (i, 0)),      # v rows   (pipelined)
        pl.BlockSpec((Ks, n_s), lambda i: (0, 0)),     # resident weights
        pl.BlockSpec((Kv, n_v), lambda i: (0, 0)),
    ]
    args = (s2d, v2d, ws_t, wv_t)
    if bias is not None:
        kernel = _fused_kernel_bias
        in_specs.append(pl.BlockSpec((1, n_s), lambda i: (0, 0)))   # resident bias
        args = args + (bias,)
    else:
        kernel = _fused_kernel_nobias

    cost = pl.CostEstimate(
        flops=2 * M * (Ks * n_s + Kv * n_v),
        transcendentals=0,
        bytes_accessed=_bytes(*args) + M * (n_s + n_v) * osize,
    )
    return pl.pallas_call(
        kernel,
        out_shape=(jax.ShapeDtypeStruct((M, n_s), out_dtype),
                   jax.ShapeDtypeStruct((M, n_v), out_dtype)),
        grid=(pl.cdiv(M, tm),),
        in_specs=in_specs,
        out_specs=(pl.BlockSpec((tm, n_s), lambda i: (i, 0)),
                   pl.BlockSpec((tm, n_v), lambda i: (i, 0))),
        compiler_params=_COMPILER_PARAMS,
        cost_estimate=cost,
    )(*args)


def _single_matmul(x2d, w_t, bias, out_dtype):
    """x2d:(M,K) @ w_t:(K,Nout) [+ bias:(1,Nout)] -> (M,Nout) in out_dtype."""
    M, K = x2d.shape
    n_out = w_t.shape[1]
    tm = _row_tile(M)
    osize = jnp.dtype(out_dtype).itemsize

    in_specs = [
        pl.BlockSpec((tm, K), lambda i: (i, 0)),
        pl.BlockSpec((K, n_out), lambda i: (0, 0)),
    ]
    if bias is None:
        kernel, args = _mm_kernel, (x2d, w_t)
    else:
        kernel, args = _mm_bias_kernel, (x2d, w_t, bias)
        in_specs.append(pl.BlockSpec((1, n_out), lambda i: (0, 0)))

    cost = pl.CostEstimate(
        flops=2 * M * K * n_out,
        transcendentals=0,
        bytes_accessed=_bytes(*args) + M * n_out * osize,
    )
    return pl.pallas_call(
        kernel,
        out_shape=jax.ShapeDtypeStruct((M, n_out), out_dtype),
        grid=(pl.cdiv(M, tm),),
        in_specs=in_specs,
        out_specs=pl.BlockSpec((tm, n_out), lambda i: (i, 0)),
        compiler_params=_COMPILER_PARAMS,
        cost_estimate=cost,
    )(*args)


# ----------------------------- Module wrapper ------------------------------

def xavier_uniform(key, shape):
    fan_out, fan_in = shape
    bound = jnp.sqrt(6.0 / (fan_in + fan_out))
    return jax.random.uniform(key, shape, jnp.float32, -bound, bound)


class LinearPallas:
    """JAX/Pallas port of the equifold Linear module (fused s/v forward)."""

    def __init__(self, nc_s_in, nc_s_out, nc_v_in, nc_v_out, add_bias=False,
                 *, key, compute_dtype=jnp.bfloat16, out_dtype=jnp.bfloat16):
        assert nc_v_out > 0 or nc_s_out > 0
        self.nc_s_in, self.nc_s_out = nc_s_in, nc_s_out
        self.nc_v_in, self.nc_v_out = nc_v_in, nc_v_out
        self.add_bias = add_bias
        self.compute_dtype = compute_dtype
        self.out_dtype = out_dtype

        k_s, k_v = jax.random.split(key)
        self.w_s = self.b_s = self.w_v = None
        if nc_s_out > 0:
            self.w_s = xavier_uniform(k_s, (nc_s_out, nc_s_in))   # torch layout (out,in)
            if add_bias:
                self.b_s = jnp.zeros((nc_s_out,), jnp.float32)
        if nc_v_out > 0:
            self.w_v = xavier_uniform(k_v, (nc_v_out, nc_v_in))
        self._refresh_kernel_params()

    def _refresh_kernel_params(self):
        """Pre-pack weights once: transposed, MXU-friendly (K, Nout), bf16."""
        cd = self.compute_dtype
        self._w_s_t = self._b = self._w_v3_t = None
        if self.nc_s_out > 0:
            self._w_s_t = self.w_s.T.astype(cd)                    # (in, out)
            if self.add_bias and self.b_s is not None:
                self._b = self.b_s.reshape(1, -1).astype(jnp.float32)
        if self.nc_v_out > 0:
            # kron(w_v, I3).T : (3*nc_v_in, 3*nc_v_out).  Lets the kernel consume
            # v.reshape(-1, 3*nc_v_in) directly (k=3 axis fastest) -> no transposes.
            self._w_v3_t = jnp.kron(
                self.w_v, jnp.eye(3, dtype=jnp.float32)).T.astype(cd)

    def __call__(self, s, v):
        cd = self.compute_dtype
        od = self.out_dtype
        s_out = v_out = None

        if self.nc_s_out > 0 and self.nc_v_out > 0:
            lead = s.shape[:-1]
            assert v.shape[:-2] == lead and v.shape[-2:] == (self.nc_v_in, 3)
            s2d = s.reshape(-1, self.nc_s_in).astype(cd)
            v2d = v.reshape(-1, self.nc_v_in * 3).astype(cd)       # free reshape
            bias = self._b if self.add_bias else None
            so, vo = _fused_linear(s2d, v2d, self._w_s_t, self._w_v3_t, bias, od)
            s_out = so.reshape(lead + (self.nc_s_out,))
            v_out = vo.reshape(lead + (self.nc_v_out, 3))
        elif self.nc_s_out > 0:
            lead = s.shape[:-1]
            s2d = s.reshape(-1, self.nc_s_in).astype(cd)
            bias = self._b if self.add_bias else None
            s_out = _single_matmul(s2d, self._w_s_t, bias, od).reshape(
                lead + (self.nc_s_out,))
        else:
            lead = v.shape[:-2]
            v2d = v.reshape(-1, self.nc_v_in * 3).astype(cd)
            v_out = _single_matmul(v2d, self._w_v3_t, None, od).reshape(
                lead + (self.nc_v_out, 3))

        return s_out, v_out


# --------------------------------- main ------------------------------------

if __name__ == "__main__":
    nc_s_in, nc_s_out = 32, 16
    nc_v_in, nc_v_out = 8, 4
    N = 8

    key = jax.random.PRNGKey(0)
    k_param, k_s, k_v, k_b, k_param2 = jax.random.split(key, 5)

    s = jax.random.normal(k_s, (N, nc_s_in), jnp.float32)
    v = jax.random.normal(k_v, (N, nc_v_in, 3), jnp.float32)
    s_bf = s.astype(jnp.bfloat16).astype(jnp.float32)
    v_bf = v.astype(jnp.bfloat16).astype(jnp.float32)

    def check(out, ref_bf, ref_f32):
        out = out.astype(jnp.float32)
        # (1) tight check against a reference using the same bf16 precision
        assert jnp.allclose(out, ref_bf, atol=2e-2, rtol=2e-2)
        # (2) loose check against full-f32 module semantics (bf16 rounding slack)
        assert jnp.allclose(out, ref_f32, atol=8e-2, rtol=8e-2)

    # --- fused path, with bias ----------------------------------------------
    mod = LinearPallas(nc_s_in, nc_s_out, nc_v_in, nc_v_out,
                       add_bias=True, key=k_param)
    # Give the bias a non-zero value (as if loaded from a checkpoint).
    mod.b_s = 0.1 * jax.random.normal(k_b, (nc_s_out,), jnp.float32)
    mod._refresh_kernel_params()

    s_out, v_out = mod(s, v)
    jax.block_until_ready((s_out, v_out))
    assert s_out.shape == (N, nc_s_out) and v_out.shape == (N, nc_v_out, 3)

    check(s_out,
          s_bf @ mod._w_s_t.astype(jnp.float32) + mod.b_s[None, :],
          jnp.einsum('ij,...j->...i', mod.w_s, s) + mod.b_s[None, :])
    check(v_out,
          (v_bf.reshape(N, -1) @ mod._w_v3_t.astype(jnp.float32)
           ).reshape(N, nc_v_out, 3),
          jnp.einsum('ij,...jk->...ik', mod.w_v, v))

    # --- fused path, no bias -------------------------------------------------
    mod_nb = LinearPallas(nc_s_in, nc_s_out, nc_v_in, nc_v_out,
                          add_bias=False, key=k_param2)
    s_out_nb, v_out_nb = mod_nb(s, v)
    jax.block_until_ready((s_out_nb, v_out_nb))
    check(s_out_nb,
          s_bf @ mod_nb._w_s_t.astype(jnp.float32),
          jnp.einsum('ij,...j->...i', mod_nb.w_s, s))
    check(v_out_nb,
          (v_bf.reshape(N, -1) @ mod_nb._w_v3_t.astype(jnp.float32)
           ).reshape(N, nc_v_out, 3),
          jnp.einsum('ij,...jk->...ik', mod_nb.w_v, v))

    # --- scalar-only path (with bias) ---------------------------------------
    mod_s = LinearPallas(nc_s_in, nc_s_out, 0, 0, add_bias=True, key=k_param)
    mod_s.b_s = 0.1 * jax.random.normal(k_b, (nc_s_out,), jnp.float32)
    mod_s._refresh_kernel_params()
    s_only, v_none = mod_s(s, None)
    jax.block_until_ready(s_only)
    assert v_none is None
    check(s_only,
          s_bf @ mod_s._w_s_t.astype(jnp.float32) + mod_s.b_s[None, :],
          jnp.einsum('ij,...j->...i', mod_s.w_s, s) + mod_s.b_s[None, :])

    # --- vector-only path ----------------------------------------------------
    mod_v = LinearPallas(0, 0, nc_v_in, nc_v_out, add_bias=False, key=k_param)
    s_none, v_only = mod_v(None, v)
    jax.block_until_ready(v_only)
    assert s_none is None
    check(v_only,
          (v_bf.reshape(N, -1) @ mod_v._w_v3_t.astype(jnp.float32)
           ).reshape(N, nc_v_out, 3),
          jnp.einsum('ij,...jk->...ik', mod_v.w_v, v))

    print("KERNEL_OK")
</pallas_src>

<mosaic_0001>
module attributes {stable_mosaic.version = 11 : i64} {
  func.func @_fused_kernel_bias(%arg0: i32, %arg1: memref<8x32xbf16, #tpu.memory_space<vmem>>, %arg2: memref<8x24xbf16, #tpu.memory_space<vmem>>, %arg3: memref<32x16xbf16, #tpu.memory_space<vmem>>, %arg4: memref<24x12xbf16, #tpu.memory_space<vmem>>, %arg5: memref<1x16xf32, #tpu.memory_space<vmem>>, %arg6: memref<8x16xbf16, #tpu.memory_space<vmem>>, %arg7: memref<8x12xbf16, #tpu.memory_space<vmem>>) attributes {dimension_semantics = [#tpu.dimension_semantics<parallel>], iteration_bounds = array<i64: 1>, scalar_prefetch = 0 : i64, scratch_operands = 0 : i64, tpu.core_type = #tpu.core_type<tc>, window_params = [{transform_indices = @transform_0, window_bounds = array<i64: 8, 32>}, {transform_indices = @transform_1, window_bounds = array<i64: 8, 24>}, {pipeline_mode = #tpu.pipeline_mode<synchronous>, transform_indices = @transform_2, window_bounds = array<i64: 32, 16>}, {pipeline_mode = #tpu.pipeline_mode<synchronous>, transform_indices = @transform_3, window_bounds = array<i64: 24, 12>}, {pipeline_mode = #tpu.pipeline_mode<synchronous>, transform_indices = @transform_4, window_bounds = array<i64: 1, 16>}, {transform_indices = @transform_5, window_bounds = array<i64: 8, 16>}, {transform_indices = @transform_6, window_bounds = array<i64: 8, 12>}]} {
    %c0 = arith.constant 0 : index
    %c0_0 = arith.constant 0 : index
    %0 = vector.load %arg1[%c0, %c0_0] : memref<8x32xbf16, #tpu.memory_space<vmem>>, vector<8x32xbf16>
    %c0_1 = arith.constant 0 : index
    %c0_2 = arith.constant 0 : index
    %1 = vector.load %arg3[%c0_1, %c0_2] : memref<32x16xbf16, #tpu.memory_space<vmem>>, vector<32x16xbf16>
    %cst = arith.constant dense<0.000000e+00> : vector<8x16xf32>
    %2 = tpu.matmul %0, %1, %cst {dimension_numbers = #tpu.dot_dimension_numbers<[1], [0], [0], [1], [0, 0, 1, 1], [], []>} : vector<8x32xbf16>, vector<32x16xbf16>, vector<8x16xf32> -> vector<8x16xf32>
    %c0_3 = arith.constant 0 : index
    %c0_4 = arith.constant 0 : index
    %3 = vector.load %arg5[%c0_3, %c0_4] : memref<1x16xf32, #tpu.memory_space<vmem>>, vector<1x16xf32>
    %4 = vector.broadcast %3 : vector<1x16xf32> to vector<8x16xf32>
    %5 = arith.addf %2, %4 : vector<8x16xf32>
    %6 = arith.truncf %5 : vector<8x16xf32> to vector<8x16xbf16>
    %c0_5 = arith.constant 0 : index
    %c0_6 = arith.constant 0 : index
    %7 = vector.load %arg6[%c0_5, %c0_6] : memref<8x16xbf16, #tpu.memory_space<vmem>>, vector<8x16xbf16>
    tpu.vector_store %arg6[%c0_5, %c0_6], %6 {strides = array<i32>} : memref<8x16xbf16, #tpu.memory_space<vmem>>, vector<8x16xbf16>,
    %c0_7 = arith.constant 0 : index
    %c0_8 = arith.constant 0 : index
    %8 = vector.load %arg2[%c0_7, %c0_8] : memref<8x24xbf16, #tpu.memory_space<vmem>>, vector<8x24xbf16>
    %c0_9 = arith.constant 0 : index
    %c0_10 = arith.constant 0 : index
    %9 = vector.load %arg4[%c0_9, %c0_10] : memref<24x12xbf16, #tpu.memory_space<vmem>>, vector<24x12xbf16>
    %cst_11 = arith.constant dense<0.000000e+00> : vector<8x12xf32>
    %10 = tpu.matmul %8, %9, %cst_11 {dimension_numbers = #tpu.dot_dimension_numbers<[1], [0], [0], [1], [0, 0, 1, 1], [], []>} : vector<8x24xbf16>, vector<24x12xbf16>, vector<8x12xf32> -> vector<8x12xf32>
    %11 = arith.truncf %10 : vector<8x12xf32> to vector<8x12xbf16>
    %c0_12 = arith.constant 0 : index
    %c0_13 = arith.constant 0 : index
    %12 = vector.load %arg7[%c0_12, %c0_13] : memref<8x12xbf16, #tpu.memory_space<vmem>>, vector<8x12xbf16>
    tpu.vector_store %arg7[%c0_12, %c0_13], %11 {strides = array<i32>} : memref<8x12xbf16, #tpu.memory_space<vmem>>, vector<8x12xbf16>,
    return
  }
  func.func @transform_0(%arg0: i32) -> (i32, i32) {
    %c0_i32 = arith.constant 0 : i32
    %c0_i32_0 = arith.constant 0 : i32
    return %arg0, %c0_i32 : i32, i32
  }
  func.func @transform_1(%arg0: i32) -> (i32, i32) {
    %c0_i32 = arith.constant 0 : i32
    %c0_i32_0 = arith.constant 0 : i32
    return %arg0, %c0_i32 : i32, i32
  }
  func.func @transform_2(%arg0: i32) -> (i32, i32) {
    %c0_i32 = arith.constant 0 : i32
    %c0_i32_0 = arith.constant 0 : i32
    %c0_i32_1 = arith.constant 0 : i32
    return %c0_i32, %c0_i32_0 : i32, i32
  }
  func.func @transform_3(%arg0: i32) -> (i32, i32) {
    %c0_i32 = arith.constant 0 : i32
    %c0_i32_0 = arith.constant 0 : i32
    %c0_i32_1 = arith.constant 0 : i32
    return %c0_i32, %c0_i32_0 : i32, i32
  }
  func.func @transform_4(%arg0: i32) -> (i32, i32) {
    %c0_i32 = arith.constant 0 : i32
    %c0_i32_0 = arith.constant 0 : i32
    %c0_i32_1 = arith.constant 0 : i32
    return %c0_i32, %c0_i32_0 : i32, i32
  }
  func.func @transform_5(%arg0: i32) -> (i32, i32) {
    %c0_i32 = arith.constant 0 : i32
    %c0_i32_0 = arith.constant 0 : i32
    return %arg0, %c0_i32 : i32, i32
  }
  func.func @transform_6(%arg0: i32) -> (i32, i32) {
    %c0_i32 = arith.constant 0 : i32
    %c0_i32_0 = arith.constant 0 : i32
    return %arg0, %c0_i32 : i32, i32
  }
}

</mosaic_0001>

<llo_original>
// kernel: tpu_custom_call.1
$region0: #{tpu_custom_call.1}
  #allocation0 [shape = 'u32[]', space=smem, size = 0x4, offset = 0x4, fixed_abs, tag = 'smem constant byte address 0x4 - core index']
  #allocation1 [shape = 'u32[72,128]{1,0:T(1,128)}', space=vmem, size = 0x9000, scoped, tag = 'internal scratch']
  %s0 = inlined_call_operand.vmem [shape: bf16[8,32], index: 0, kind: input, shape index: {}]
  %s1 = inlined_call_operand.vmem [shape: bf16[8,24], index: 1, kind: input, shape index: {}]
  %s2 = inlined_call_operand.vmem [shape: bf16[32,16], index: 2, kind: input, shape index: {}]
  %s3 = inlined_call_operand.vmem [shape: bf16[24,12], index: 3, kind: input, shape index: {}]
  %s4 = inlined_call_operand.vmem [shape: f32[1,16], index: 4, kind: input, shape index: {}]
  %s5 = inlined_call_operand.hbm [shape: bf16[8,16], index: 5, kind: output, shape index: {0}]
  %s6 = inlined_call_operand.hbm [shape: bf16[8,12], index: 6, kind: output, shape index: {1}]
  %7 = xla_tuple %s5, %s6
  %s8 = sld [smem:[#allocation0]]
  $region38: #{tpu_custom_call.1} parent=0
    _
  %s10 = ssub.s32 1, %s8
  %s11 = scalar_select 0, %s10, %s8
  $region1: #{tpu_custom_call.1} parent=0
    #allocation2 [shape = 'u8[2048]{0}', space=vmem, size = 0x800, scoped, tag = 'output window, operand 0, single buffered']
    #allocation3 [shape = 's32[1]{0}', space=sflag, size = 0x4, scoped, tag = 'scoped memory for tpu_custom_call.1']
    #allocation4 [shape = 'u8[2048]{0}', space=vmem, size = 0x800, scoped, tag = 'output window, operand 1, single buffered']
    #allocation5 [shape = 's32[1]{0}', space=sflag, size = 0x4, scoped, tag = 'scoped memory for tpu_custom_call.1']
    %12 = vsyncpa [#allocation3], 0
    %13 = vsyncpa [#allocation5], 0
    // Predicated region
    $region2: #{tpu_custom_call.1} parent=1 // pred_check
      _
    $region3: #{tpu_custom_call.1} parent=1 // pred_check_branch
      %15 = sbr.rel (0) target = $region5
    $region4: #{tpu_custom_call.1} parent=1 // pred_region
      _
    $region5: #{tpu_custom_call.1} parent=1 // pred_fallthru
      _
    // Predicated region
    $region6: #{tpu_custom_call.1} parent=1 // pred_check
      _
    $region7: #{tpu_custom_call.1} parent=1 // pred_check_branch
      %17 = sbr.rel (0) target = $region9
    $region8: #{tpu_custom_call.1} parent=1 // pred_region
      _
    $region9: #{tpu_custom_call.1} parent=1 // pred_fallthru
      _
    // Predicated region
    $region10: #{tpu_custom_call.1} parent=1 // pred_check
      _
    $region11: #{tpu_custom_call.1} parent=1 // pred_check_branch
      %19 = sbr.rel (0) target = $region13
    $region12: #{tpu_custom_call.1} parent=1 // pred_region
      _
    $region13: #{tpu_custom_call.1} parent=1 // pred_fallthru
      _
    // Predicated region
    $region14: #{tpu_custom_call.1} parent=1 // pred_check
      _
    $region15: #{tpu_custom_call.1} parent=1 // pred_check_branch
      %21 = sbr.rel (0) target = $region17
    $region16: #{tpu_custom_call.1} parent=1 // pred_region
      _
    $region17: #{tpu_custom_call.1} parent=1 // pred_fallthru
      _
    // Predicated region
    $region18: #{tpu_custom_call.1} parent=1 // pred_check
      _
    $region19: #{tpu_custom_call.1} parent=1 // pred_check_branch
      %23 = sbr.rel (0) target = $region21
    $region20: #{tpu_custom_call.1} parent=1 // pred_region
      _
    $region21: #{tpu_custom_call.1} parent=1 // pred_fallthru
      _
    %v25 = vld [vmem:[%s0] sm:$0xf]
    %v26 = vld [vmem:[%s2] sm:$0xf]
    %v27 = vld [vmem:[%s2 + $0x4] sm:$0xf]
    %v28 = vld [vmem:[%s2 + $0x8] sm:$0xf]
    %v29 = vld [vmem:[%s2 + $0xc] sm:$0xf]
    %v30 = vld [vmem:[%s4] sm:$0x1]
    %v32 = vperm.slane %v30, 0
    %v38 = vunpack.c.l.b16 %v26
    %v39 = vunpack.c.l.b16 %v27
    %v40 = vunpack.c.l.b16 %v28
    %v41 = vunpack.c.l.b16 %v29
    %v42 = vpack.c.b16 %v39, %v38
    %v43 = vpack.c.b16 %v41, %v40
    %vm46 = vcmask 261120
    %v48 = vsel %vm46, %v25, 0
    %50 = vmatpush.bf16.msra.mxu0 0
    %51 = vmatpush.bf16.msra.mxu0 0
    %52 = vmatpush.bf16.msra.mxu0 0
    %53 = vmatpush.bf16.msra.mxu0 0
    %54 = vmatpush.bf16.msra.mxu0 0
    %55 = vmatpush.bf16.msra.mxu0 0
    %56 = vmatpush.bf16.msra.mxu0 %v43
    %57 = vmatpush.bf16.msra.mxu0 %v42
    %58 = vmatmul.bf16.gmra.mxu0 %v48
    %v59 = vpop.f32.mrf.mxu0
    %v60 = vadd.f32 %v32, %v59
    %v61 = vpop.f32.mrf.mxu0
    %62 = vdwg.mxu0
    %v63 = vpack.c.bf16 %v60, %v60
    %vm64 = vcmask 125952
    %65 = vst.msk [vmem:[#allocation2] sm:$0xf] %vm64, %v63
    %v66 = vld [vmem:[%s1] sm:$0xf]
    %v67 = vld [vmem:[%s3] sm:$0xf]
    %v68 = vld [vmem:[%s3 + $0x4] sm:$0xf]
    %v69 = vld [vmem:[%s3 + $0x8] sm:$0xf]
    %v73 = vunpack.c.l.b16 %v67
    %v74 = vunpack.c.l.b16 %v68
    %v75 = vunpack.c.l.b16 %v69
    %v76 = vpack.c.b16 %v74, %v73
    %v77 = vpack.c.b16 %v75, %v75
    %vm79 = vcmask 195584
    %v81 = vsel %vm79, %v66, 0
    %vm83 = vcmask 1043456
    %v85 = vsel %vm83, %v77, 0
    %87 = vmatpush.bf16.msra.mxu0 0
    %88 = vmatpush.bf16.msra.mxu0 0
    %89 = vmatpush.bf16.msra.mxu0 0
    %90 = vmatpush.bf16.msra.mxu0 0
    %91 = vmatpush.bf16.msra.mxu0 0
    %92 = vmatpush.bf16.msra.mxu0 0
    %93 = vmatpush.bf16.msra.mxu0 %v85
    %94 = vmatpush.bf16.msra.mxu0 %v76
    %95 = vmatmul.bf16.gmra.mxu0 %v81
    %v96 = vpop.f32.mrf.mxu0
    %v97 = vadd.f32 0.0, %v96
    %v98 = vpop.f32.mrf.mxu0
    %99 = vdwg.mxu0
    %v100 = vpack.c.bf16 %v97, %v97
    %vm101 = vcmask 93184
    %102 = vst.msk [vmem:[#allocation4] sm:$0xf] %vm101, %v100
    // Predicated region
    $region22: #{tpu_custom_call.1} parent=1 // pred_check
      _
    $region23: #{tpu_custom_call.1} parent=1 // pred_check_branch
      %104 = sbr.rel (0) target = $region25
    $region24: #{tpu_custom_call.1} parent=1 // pred_region
      %106 = vsyncadd [#allocation3], 0
      %s108 = sshll.u32 [#allocation2], 4
      %s109 = int_to_ptr.vmem [resolvable:$true] %s108
      %s110 = sshll.u32 %s5, 4
      %s111 = int_to_ptr.hbm [resolvable:$true] %s110
      %113 = dma.vmem_to_hbm [thread:$0]  %s109, 64, %s111, [#allocation3]
    $region25: #{tpu_custom_call.1} parent=1 // pred_fallthru
      _
    // Predicated region
    $region26: #{tpu_custom_call.1} parent=1 // pred_check
      _
    $region27: #{tpu_custom_call.1} parent=1 // pred_check_branch
      %115 = sbr.rel (0) target = $region29
    $region28: #{tpu_custom_call.1} parent=1 // pred_region
      %117 = vsyncadd [#allocation5], 0
      %s119 = sshll.u32 [#allocation4], 4
      %s120 = int_to_ptr.vmem [resolvable:$true] %s119
      %s121 = sshll.u32 %s6, 4
      %s122 = int_to_ptr.hbm [resolvable:$true] %s121
      %124 = dma.vmem_to_hbm [thread:$0]  %s120, 64, %s122, [#allocation5]
    $region29: #{tpu_custom_call.1} parent=1 // pred_fallthru
      _
    // Predicated region
    $region30: #{tpu_custom_call.1} parent=1 // pred_check
      _
    $region31: #{tpu_custom_call.1} parent=1 // pred_check_branch
      %126 = sbr.rel (0) target = $region33
    $region32: #{tpu_custom_call.1} parent=1 // pred_region
      %128 = dma.done [#allocation3], 64
    $region33: #{tpu_custom_call.1} parent=1 // pred_fallthru
      _
    // Predicated region
    $region34: #{tpu_custom_call.1} parent=1 // pred_check
      _
    $region35: #{tpu_custom_call.1} parent=1 // pred_check_branch
      %130 = sbr.rel (0) target = $region37
    $region36: #{tpu_custom_call.1} parent=1 // pred_region
      %132 = dma.done [#allocation5], 64
    $region37: #{tpu_custom_call.1} parent=1 // pred_fallthru
      _
    %133 = vsyncpa [#allocation3], 1
    %134 = vsyncpa [#allocation5], 1

</llo_original>
